<compile_context>
chip_gen: v5e
topology: v5e:2x2
jax: 0.10.0
libtpu: 0.0.40
codegen_flags: <defaults>
</compile_context>

<pallas_src>
import jax
import jax.numpy as jnp
import numpy as np
from jax import lax
from jax.experimental import pallas as pl
from jax.experimental.pallas import tpu as pltpu


# ----------------------------- Pallas kernel -----------------------------
def _hybrid_kernel(x_ref, w_ref, b_ref, fc1_ref, fc2_ref, sbn_ref, hbn_ref, out_ref):
    f32 = jnp.float32
    # Single MXU matmul covers every convolution branch (bf16 in, f32 accumulate).
    combined = (jnp.dot(w_ref[...], x_ref[...], preferred_element_type=f32)
                + b_ref[...])                                    # (Cout, HW), f32

    # SE block: per-image global average pool (lane reduction), tiny FCs, channel gate.
    hw = combined.shape[1]
    pooled = jnp.sum(combined, axis=1, keepdims=True) * (1.0 / hw)          # (Cout, 1)
    hid = jnp.maximum(jnp.dot(fc1_ref[...], pooled, preferred_element_type=f32), 0.0)
    gate = jax.nn.sigmoid(jnp.dot(fc2_ref[...], hid, preferred_element_type=f32))  # (Cout, 1)

    y = combined * gate                                           # channel re-calibration
    y = y * sbn_ref[...] + hbn_ref[...]                           # final BatchNorm (eval, folded)
    out_ref[...] = jnp.maximum(y, 0.0)                            # ReLU


# ----------------------------- glue (plain JAX) -----------------------------
def _im2col_nchw(x, k, pad):
    """(B,C,H,W) -> (B, k*k*C, H*W); row index = (kh*k+kw)*C + c."""
    B, C, H, W = x.shape
    xp = jnp.pad(x, ((0, 0), (0, 0), (pad, pad), (pad, pad)))
    cols = [xp[:, :, kh:kh + H, kw:kw + W] for kh in range(k) for kw in range(k)]
    return jnp.concatenate(cols, axis=1).reshape(B, k * k * C, H * W)


def _maxpool3x3_s1_nchw(x):
    B, C, H, W = x.shape
    xp = jnp.pad(x, ((0, 0), (0, 0), (1, 1), (1, 1)), constant_values=-jnp.inf)
    shifts = jnp.stack([xp[:, :, kh:kh + H, kw:kw + W] for kh in range(3) for kw in range(3)], 0)
    return jnp.max(shifts, axis=0).reshape(B, C, H * W)


def _wflat(w_oihw):  # (O, I, KH, KW) -> (KH*KW*I, O), matching the im2col row ordering
    return jnp.transpose(w_oihw, (2, 3, 1, 0)).reshape(-1, w_oihw.shape[0])


def _bn_fold(bn, eps=1e-5):
    s = bn['gamma'] / jnp.sqrt(bn['var'] + eps)
    return s, bn['beta'] - bn['mean'] * s


@jax.jit
def hybrid_block_forward(x_nchw, p, eps=1e-5):
    B, Cin, H, W = x_nchw.shape
    Cout = p['vgg_w'].shape[0]
    c4, Cr = Cout // 4, p['fc1_w'].shape[0]
    HW = H * W

    x = x_nchw.astype(jnp.float32)                                          # stay in NCHW

    # ---- activations (channel-major, per image) ----------------------------
    # X = [5x5 im2col (25*Cin rows) | 3x3 max-pooled pixels (Cin rows) | dense 3x3 im2col].
    # The 3x3 and 1x1 windows are subsets of the 5x5 window, so rows 0..26*Cin feed every
    # non-dense branch at once.
    X5 = _im2col_nchw(x, 5, 2)                                              # (B, 25*Cin, HW)
    Xmp = _maxpool3x3_s1_nchw(x)                                            # (B, Cin, HW)

    # DenseNet branch: BN + ReLU on the raw activation BEFORE padding (matches PyTorch).
    s_in, h_in = _bn_fold(p['bn_in'], eps)
    x_bn = jnp.maximum(x * s_in[None, :, None, None] + h_in[None, :, None, None], 0.0)
    XD = _im2col_nchw(x_bn, 3, 1)                                           # (B, 9*Cin, HW)

    X = jnp.concatenate([X5, Xmp, XD], axis=1)                              # (B, K, HW)
    KA, KD = 26 * Cin, 9 * Cin
    K = KA + KD

    # ---- merged conv weight (K, Cout) ---------------------------------------
    def flat_hw(w):   # (O, I, kh, kw) -> (kh, kw, I, O)
        return jnp.transpose(w, (2, 3, 1, 0)).astype(jnp.float32)

    W_A = jnp.zeros((KA, Cout), jnp.float32)
    # Inception 5x5: all 25 window positions, output cols [2*c4 : 3*c4].
    W_A = W_A.at[:25 * Cin, 2 * c4:3 * c4].add(flat_hw(p['i5_w']).reshape(25 * Cin, c4))
    # 3x3 branches live in the centre 3x3 of the 5x5 window.
    wvgg, wi3 = flat_hw(p['vgg_w']), flat_hw(p['i3_w'])
    for kh in range(3):
        for kw in range(3):
            r = ((kh + 1) * 5 + (kw + 1)) * Cin
            W_A = W_A.at[r:r + Cin, :].add(wvgg[kh, kw])
            W_A = W_A.at[r:r + Cin, c4:2 * c4].add(wi3[kh, kw])
    # 1x1 branches live at the centre pixel of the 5x5 window.
    rc = 12 * Cin
    if Cin != Cout:   # ResNet shortcut = 1x1 conv + BN (scale folded into the weight)
        s_res, h_res = _bn_fold(p['bn_res'], eps)
        W_A = W_A.at[rc:rc + Cin, :].add(flat_hw(p['res_w'])[0, 0] * s_res[None, :])
        res_bias = s_res * p['res_b'] + h_res
    else:             # nn.Identity shortcut
        W_A = W_A.at[rc:rc + Cin, :].add(jnp.eye(Cin, dtype=jnp.float32))
        res_bias = jnp.zeros((Cout,), jnp.float32)
    W_A = W_A.at[rc:rc + Cin, :c4].add(flat_hw(p['i1_w'])[0, 0])
    # Max-pool 1x1 branch reads the appended max-pool rows.
    W_A = W_A.at[25 * Cin:, 3 * c4:].add(flat_hw(p['ip_w'])[0, 0])

    W_D = _wflat(p['dense_w'])                                              # (9*Cin, Cout)
    W_T = jnp.concatenate([W_A, W_D], axis=0).T                             # (Cout, K)

    # ---- merged bias & folded output BN -------------------------------------
    b_tot = (p['vgg_b'] + p['dense_b'] + res_bias
             + jnp.concatenate([p['i1_b'], p['i3_b'], p['i5_b'], p['ip_b']]))
    s_out, h_out = _bn_fold(p['bn_out'], eps)

    col = lambda v: v.reshape(Cout, 1).astype(jnp.float32)
    b_tot, sbn, hbn = col(b_tot), col(s_out), col(h_out)
    Wfc1 = p['fc1_w'].astype(jnp.float32)                                   # (Cr, Cout) torch layout
    Wfc2 = p['fc2_w'].astype(jnp.float32)                                   # (Cout, Cr)

    # bf16 on the MXU operands; f32 accumulation + f32 elementwise tail inside the kernel.
    bf16 = jnp.bfloat16
    X = X.astype(bf16)
    W_T = W_T.astype(bf16)

    resident = lambda shape: pl.BlockSpec(shape, lambda b: (0,) * len(shape))
    ce = pl.CostEstimate(
        flops=2 * B * HW * Cout * K + 4 * B * Cout * Cr + 8 * B * HW * Cout,
        transcendentals=B * Cout,
        bytes_accessed=2 * (X.size + W_T.size) + 4 * B * HW * Cout)

    out = pl.pallas_call(
        _hybrid_kernel,
        out_shape=jax.ShapeDtypeStruct((B, Cout, HW), jnp.float32),
        grid_spec=pltpu.PrefetchScalarGridSpec(
            num_scalar_prefetch=0,
            grid=(B,),
            in_specs=[
                pl.BlockSpec((None, K, HW), lambda b: (b, 0, 0)),   # activations streamed per image
                resident((Cout, K)),                                # merged conv weight (resident)
                resident((Cout, 1)),                                # merged bias
                resident((Cr, Cout)), resident((Cout, Cr)),         # SE FC weights
                resident((Cout, 1)), resident((Cout, 1)),           # final BN scale / shift
            ],
            out_specs=pl.BlockSpec((None, Cout, HW), lambda b: (b, 0, 0)),  # lane-dense (HW) output
        ),
        compiler_params=pltpu.CompilerParams(
            dimension_semantics=("parallel",),
            vmem_limit_bytes=32 * 1024 * 1024),
        cost_estimate=ce,
    )(X, W_T, b_tot, Wfc1, Wfc2, sbn, hbn)

    return out.reshape(B, Cout, H, W)                                       # already NCHW


# ----------------------------- parameters -----------------------------
def init_params(key, cin, cout):
    ks = jax.random.split(key, 16)
    conv_w = lambda k, o, i, kh, kw: jax.random.normal(k, (o, i, kh, kw), jnp.float32) * 0.1
    conv_b = lambda k, o: jax.random.normal(k, (o,), jnp.float32) * 0.05
    c4, cr = cout // 4, cout // 16
    p = {
        'vgg_w': conv_w(ks[0], cout, cin, 3, 3), 'vgg_b': conv_b(ks[1], cout),
        'res_w': conv_w(ks[2], cout, cin, 1, 1), 'res_b': conv_b(ks[3], cout),
        'dense_w': conv_w(ks[4], cout, cin, 3, 3), 'dense_b': conv_b(ks[5], cout),
        'i1_w': conv_w(ks[6], c4, cin, 1, 1), 'i1_b': conv_b(ks[7], c4),
        'i3_w': conv_w(ks[8], c4, cin, 3, 3), 'i3_b': conv_b(ks[9], c4),
        'i5_w': conv_w(ks[10], c4, cin, 5, 5), 'i5_b': conv_b(ks[11], c4),
        'ip_w': conv_w(ks[12], c4, cin, 1, 1), 'ip_b': conv_b(ks[13], c4),
        'fc1_w': jax.random.normal(ks[14], (cr, cout), jnp.float32) * 0.2,  # torch Linear (out,in)
        'fc2_w': jax.random.normal(ks[15], (cout, cr), jnp.float32) * 0.2,
    }
    # BatchNorms: PyTorch default init, inference mode
    for name, ch in (('bn_in', cin), ('bn_res', cout), ('bn_out', cout)):
        p[name] = dict(gamma=jnp.ones((ch,), jnp.float32), beta=jnp.zeros((ch,), jnp.float32),
                       mean=jnp.zeros((ch,), jnp.float32), var=jnp.ones((ch,), jnp.float32))
    return p


# ----------------------------- pure-JAX reference -----------------------------
def reference_forward(x_nchw, p, eps=1e-5):
    x = jnp.transpose(x_nchw, (0, 2, 3, 1)).astype(jnp.float32)

    def conv(inp, w, b, pad):
        wh = jnp.transpose(w, (2, 3, 1, 0))  # OIHW -> HWIO
        y = lax.conv_general_dilated(inp, wh, (1, 1), [(pad, pad), (pad, pad)],
                                     dimension_numbers=("NHWC", "HWIO", "NHWC"))
        return y + b

    def bn(inp, d):
        return (inp - d['mean']) / jnp.sqrt(d['var'] + eps) * d['gamma'] + d['beta']

    vgg = conv(x, p['vgg_w'], p['vgg_b'], 1)
    res = bn(conv(x, p['res_w'], p['res_b'], 0), p['bn_res'])
    dense = conv(jnp.maximum(bn(x, p['bn_in']), 0.0), p['dense_w'], p['dense_b'], 1)
    mp = lax.reduce_window(x, -jnp.inf, lax.max, (1, 3, 3, 1), (1, 1, 1, 1),
                           [(0, 0), (1, 1), (1, 1), (0, 0)])
    inc = jnp.concatenate([conv(x, p['i1_w'], p['i1_b'], 0),
                           conv(x, p['i3_w'], p['i3_b'], 1),
                           conv(x, p['i5_w'], p['i5_b'], 2),
                           conv(mp, p['ip_w'], p['ip_b'], 0)], axis=-1)
    combined = vgg + res + dense + inc
    pooled = combined.mean(axis=(1, 2))
    hid = jnp.maximum(pooled @ p['fc1_w'].T, 0.0)
    gate = jax.nn.sigmoid(hid @ p['fc2_w'].T)
    y = combined * gate[:, None, None, :]
    y = jnp.maximum(bn(y, p['bn_out']), 0.0)
    return jnp.transpose(y, (0, 3, 1, 2))


if __name__ == "__main__":
    key = jax.random.PRNGKey(0)
    kx, kp = jax.random.split(key)
    B, Cin, H, W = 2, 4, 16, 16
    Cout = 32                      # reduction=16 -> SE hidden = 2; inception branch = 8 channels
    x = jax.random.normal(kx, (B, Cin, H, W), jnp.float32)   # NCHW, like PyTorch
    params = init_params(kp, Cin, Cout)

    out = jax.block_until_ready(hybrid_block_forward(x, params))
    ref = jax.block_until_ready(reference_forward(x, params))
    assert out.shape == (B, Cout, H, W), out.shape
    # bf16 MXU operands with f32 accumulation -> compare against f32 reference at bf16 tolerance.
    np.testing.assert_allclose(np.asarray(out), np.asarray(ref), rtol=2e-2, atol=2e-2)
    print("KERNEL_OK")
</pallas_src>

<mosaic_0001>
module attributes {stable_mosaic.version = 11 : i64} {
  func.func @_hybrid_kernel(%arg0: i32, %arg1: memref<1x140x256xbf16, #tpu.memory_space<vmem>>, %arg2: memref<32x140xbf16, #tpu.memory_space<vmem>>, %arg3: memref<32x1xf32, #tpu.memory_space<vmem>>, %arg4: memref<2x32xf32, #tpu.memory_space<vmem>>, %arg5: memref<32x2xf32, #tpu.memory_space<vmem>>, %arg6: memref<32x1xf32, #tpu.memory_space<vmem>>, %arg7: memref<32x1xf32, #tpu.memory_space<vmem>>, %arg8: memref<1x32x256xf32, #tpu.memory_space<vmem>>) attributes {dimension_semantics = [#tpu.dimension_semantics<parallel>], iteration_bounds = array<i64: 2>, scalar_prefetch = 0 : i64, scratch_operands = 0 : i64, tpu.core_type = #tpu.core_type<tc>, window_params = [{transform_indices = @transform_0, window_bounds = array<i64: 1, 140, 256>}, {pipeline_mode = #tpu.pipeline_mode<synchronous>, transform_indices = @transform_1, window_bounds = array<i64: 32, 140>}, {pipeline_mode = #tpu.pipeline_mode<synchronous>, transform_indices = @transform_2, window_bounds = array<i64: 32, 1>}, {pipeline_mode = #tpu.pipeline_mode<synchronous>, transform_indices = @transform_3, window_bounds = array<i64: 2, 32>}, {pipeline_mode = #tpu.pipeline_mode<synchronous>, transform_indices = @transform_4, window_bounds = array<i64: 32, 2>}, {pipeline_mode = #tpu.pipeline_mode<synchronous>, transform_indices = @transform_5, window_bounds = array<i64: 32, 1>}, {pipeline_mode = #tpu.pipeline_mode<synchronous>, transform_indices = @transform_6, window_bounds = array<i64: 32, 1>}, {transform_indices = @transform_7, window_bounds = array<i64: 1, 32, 256>}]} {
    %c0 = arith.constant 0 : index
    %c0_0 = arith.constant 0 : index
    %0 = vector.load %arg2[%c0, %c0_0] : memref<32x140xbf16, #tpu.memory_space<vmem>>, vector<32x140xbf16>
    %c0_1 = arith.constant 0 : index
    %c0_2 = arith.constant 0 : index
    %c0_3 = arith.constant 0 : index
    %1 = vector.load %arg1[%c0_1, %c0_2, %c0_3] : memref<1x140x256xbf16, #tpu.memory_space<vmem>>, vector<1x140x256xbf16>
    %2 = vector.shape_cast %1 : vector<1x140x256xbf16> to vector<140x256xbf16>
    %cst = arith.constant dense<0.000000e+00> : vector<32x256xf32>
    %3 = tpu.matmul %0, %2, %cst {dimension_numbers = #tpu.dot_dimension_numbers<[1], [0], [0], [1], [0, 0, 1, 1], [], []>} : vector<32x140xbf16>, vector<140x256xbf16>, vector<32x256xf32> -> vector<32x256xf32>
    %c0_4 = arith.constant 0 : index
    %c0_5 = arith.constant 0 : index
    %4 = vector.load %arg3[%c0_4, %c0_5] : memref<32x1xf32, #tpu.memory_space<vmem>>, vector<32x1xf32>
    %5 = vector.broadcast %4 : vector<32x1xf32> to vector<32x256xf32>
    %6 = arith.addf %3, %5 : vector<32x256xf32>
    %cst_6 = arith.constant dense<0.000000e+00> : vector<32xf32>
    %7 = vector.multi_reduction <add>, %6, %cst_6 [1] : vector<32x256xf32> to vector<32xf32>
    %8 = vector.shape_cast %7 : vector<32xf32> to vector<32x1xf32>
    %cst_7 = arith.constant 3.906250e-03 : f32
    %9 = vector.broadcast %cst_7 : f32 to vector<32x1xf32>
    %10 = arith.mulf %8, %9 : vector<32x1xf32>
    %c0_8 = arith.constant 0 : index
    %c0_9 = arith.constant 0 : index
    %11 = vector.load %arg4[%c0_8, %c0_9] : memref<2x32xf32, #tpu.memory_space<vmem>>, vector<2x32xf32>
    %cst_10 = arith.constant dense<0.000000e+00> : vector<2x1xf32>
    %12 = tpu.matmul %11, %10, %cst_10 {dimension_numbers = #tpu.dot_dimension_numbers<[1], [0], [0], [1], [0, 0, 1, 1], [], []>} : vector<2x32xf32>, vector<32x1xf32>, vector<2x1xf32> -> vector<2x1xf32>
    %cst_11 = arith.constant 0.000000e+00 : f32
    %13 = vector.broadcast %cst_11 : f32 to vector<2x1xf32>
    %14 = arith.maximumf %12, %13 : vector<2x1xf32>
    %c0_12 = arith.constant 0 : index
    %c0_13 = arith.constant 0 : index
    %15 = vector.load %arg5[%c0_12, %c0_13] : memref<32x2xf32, #tpu.memory_space<vmem>>, vector<32x2xf32>
    %cst_14 = arith.constant dense<0.000000e+00> : vector<32x1xf32>
    %16 = tpu.matmul %15, %14, %cst_14 {dimension_numbers = #tpu.dot_dimension_numbers<[1], [0], [0], [1], [0, 0, 1, 1], [], []>} : vector<32x2xf32>, vector<2x1xf32>, vector<32x1xf32> -> vector<32x1xf32>
    %17 = arith.negf %16 : vector<32x1xf32>
    %18 = math.exp %17 : vector<32x1xf32>
    %cst_15 = arith.constant 1.000000e+00 : f32
    %19 = vector.broadcast %cst_15 : f32 to vector<32x1xf32>
    %20 = arith.addf %19, %18 : vector<32x1xf32>
    %21 = arith.divf %19, %20 : vector<32x1xf32>
    %22 = vector.broadcast %21 : vector<32x1xf32> to vector<32x256xf32>
    %23 = arith.mulf %6, %22 : vector<32x256xf32>
    %c0_16 = arith.constant 0 : index
    %c0_17 = arith.constant 0 : index
    %24 = vector.load %arg6[%c0_16, %c0_17] : memref<32x1xf32, #tpu.memory_space<vmem>>, vector<32x1xf32>
    %25 = vector.broadcast %24 : vector<32x1xf32> to vector<32x256xf32>
    %26 = arith.mulf %23, %25 : vector<32x256xf32>
    %c0_18 = arith.constant 0 : index
    %c0_19 = arith.constant 0 : index
    %27 = vector.load %arg7[%c0_18, %c0_19] : memref<32x1xf32, #tpu.memory_space<vmem>>, vector<32x1xf32>
    %28 = vector.broadcast %27 : vector<32x1xf32> to vector<32x256xf32>
    %29 = arith.addf %26, %28 : vector<32x256xf32>
    %cst_20 = arith.constant 0.000000e+00 : f32
    %30 = vector.broadcast %cst_20 : f32 to vector<32x256xf32>
    %31 = arith.maximumf %29, %30 : vector<32x256xf32>
    %c0_21 = arith.constant 0 : index
    %c0_22 = arith.constant 0 : index
    %c0_23 = arith.constant 0 : index
    %32 = vector.load %arg8[%c0_21, %c0_22, %c0_23] : memref<1x32x256xf32, #tpu.memory_space<vmem>>, vector<1x32x256xf32>
    %33 = vector.shape_cast %32 : vector<1x32x256xf32> to vector<32x256xf32>
    %34 = vector.shape_cast %31 : vector<32x256xf32> to vector<1x32x256xf32>
    tpu.vector_store %arg8[%c0_21, %c0_22, %c0_23], %34 {strides = array<i32>} : memref<1x32x256xf32, #tpu.memory_space<vmem>>, vector<1x32x256xf32>,
    return
  }
  func.func @transform_0(%arg0: i32) -> (i32, i32, i32) {
    %c0_i32 = arith.constant 0 : i32
    %c0_i32_0 = arith.constant 0 : i32
    %c0_i32_1 = arith.constant 0 : i32
    return %arg0, %c0_i32, %c0_i32_0 : i32, i32, i32
  }
  func.func @transform_1(%arg0: i32) -> (i32, i32) {
    %c0_i32 = arith.constant 0 : i32
    %c0_i32_0 = arith.constant 0 : i32
    %c0_i32_1 = arith.constant 0 : i32
    return %c0_i32, %c0_i32_0 : i32, i32
  }
  func.func @transform_2(%arg0: i32) -> (i32, i32) {
    %c0_i32 = arith.constant 0 : i32
    %c0_i32_0 = arith.constant 0 : i32
    %c0_i32_1 = arith.constant 0 : i32
    return %c0_i32, %c0_i32_0 : i32, i32
  }
  func.func @transform_3(%arg0: i32) -> (i32, i32) {
    %c0_i32 = arith.constant 0 : i32
    %c0_i32_0 = arith.constant 0 : i32
    %c0_i32_1 = arith.constant 0 : i32
    return %c0_i32, %c0_i32_0 : i32, i32
  }
  func.func @transform_4(%arg0: i32) -> (i32, i32) {
    %c0_i32 = arith.constant 0 : i32
    %c0_i32_0 = arith.constant 0 : i32
    %c0_i32_1 = arith.constant 0 : i32
    return %c0_i32, %c0_i32_0 : i32, i32
  }
  func.func @transform_5(%arg0: i32) -> (i32, i32) {
    %c0_i32 = arith.constant 0 : i32
    %c0_i32_0 = arith.constant 0 : i32
    %c0_i32_1 = arith.constant 0 : i32
    return %c0_i32, %c0_i32_0 : i32, i32
  }
  func.func @transform_6(%arg0: i32) -> (i32, i32) {
    %c0_i32 = arith.constant 0 : i32
    %c0_i32_0 = arith.constant 0 : i32
    %c0_i32_1 = arith.constant 0 : i32
    return %c0_i32, %c0_i32_0 : i32, i32
  }
  func.func @transform_7(%arg0: i32) -> (i32, i32, i32) {
    %c0_i32 = arith.constant 0 : i32
    %c0_i32_0 = arith.constant 0 : i32
    %c0_i32_1 = arith.constant 0 : i32
    return %arg0, %c0_i32, %c0_i32_0 : i32, i32, i32
  }
}

</mosaic_0001>

<llo_original>
// kernel: hybrid_block_forward.1
$region0: #{hybrid_block_forward.1}
  #allocation0 [shape = 'u32[]', space=smem, size = 0x4, offset = 0x4, fixed_abs, tag = 'smem constant byte address 0x4 - core index']
  #allocation1 [shape = 'u32[72,128]{1,0:T(1,128)}', space=vmem, size = 0x9000, scoped, tag = 'internal scratch']
  %s0 = inlined_call_operand.vmem [shape: bf16[2,140,256], index: 0, kind: input, shape index: {}]
  %s1 = inlined_call_operand.vmem [shape: bf16[32,140], index: 1, kind: input, shape index: {}]
  %s2 = inlined_call_operand.vmem [shape: f32[32,1], index: 2, kind: input, shape index: {}]
  %s3 = inlined_call_operand.vmem [shape: f32[2,32], index: 3, kind: input, shape index: {}]
  %s4 = inlined_call_operand.vmem [shape: f32[32,2], index: 4, kind: input, shape index: {}]
  %s5 = inlined_call_operand.vmem [shape: f32[32,1], index: 5, kind: input, shape index: {}]
  %s6 = inlined_call_operand.vmem [shape: f32[32,1], index: 6, kind: input, shape index: {}]
  %s7 = inlined_call_operand.vmem [shape: f32[2,32,256], index: 7, kind: output, shape index: {}]
  %s8 = sld [smem:[#allocation0]]
  $region61: #{hybrid_block_forward.1} parent=0
    _
  %s10 = ssub.s32 1, %s8
  %s11 = scalar_select 0, %s10, %s8
  loop: start=0, step=1, limit=4
  $region2: #{hybrid_block_forward.1} parent=0 // loop_pre_header
    _
  $region3: #{hybrid_block_forward.1} parent=0 // loop_header
    %s13 = sphi 0, %s17
    %p14 = scmp.ge.s32.totalorder %s13, 4
    %s23 = sphi 0, %s25
    %s26 = sphi 0, %s23
    %s27 = sphi 0, %s26
    %s43 = sphi 0, %s27
    %s47 = sphi 0, %s47
    %s49 = sphi 0, %s47
    %s50 = sphi 0, %s49
    %s64 = sphi 0, %s50
    %s68 = sphi 0, %s68
    %s70 = sphi 0, %s68
    %s71 = sphi 0, %s70
    %s85 = sphi 0, %s71
    %s89 = sphi 0, %s89
    %s91 = sphi 0, %s89
    %s92 = sphi 0, %s91
    %s106 = sphi 0, %s92
    %s110 = sphi 0, %s110
    %s112 = sphi 0, %s110
    %s113 = sphi 0, %s112
    %s127 = sphi 0, %s113
    %s131 = sphi 0, %s131
    %s133 = sphi 0, %s131
    %s134 = sphi 0, %s133
    %s148 = sphi 0, %s134
    %s152 = sphi 0, %s152
    %s154 = sphi 0, %s152
    %s155 = sphi 0, %s154
    %s169 = sphi 0, %s155
    %s175 = sphi 0, %s177
    %s178 = sphi 0, %s175
    %s179 = sphi 0, %s178
    %s195 = sphi 0, %s179
  $region4: #{hybrid_block_forward.1} parent=0 // loop_header_branch
    %16 = sbr.rel (%p14) target = $region8
  $region5: #{hybrid_block_forward.1} parent=0 // loop_body
    %s18 = ssub.s32 %s13, 1
    %s19 = ssub.s32 %s13, 2
    %s20 = sadd.s32 %s13, 1
    %s21 = ssub.s32 %s13, %s20
    %p22 = scmp.eq.s32.totalorder %s21, 0
    %s24 = sadd.s32 %s23, 1
    %s25 = scalar_select %p22, %s23, %s24
    %p28 = pneg %p22
    %p29 = scmp.eq.s32.totalorder %s13, 1
    %p30 = por %p28, %p29
    %p31 = scmp.ne.s32.totalorder %s23, %s26
    %p32 = scmp.eq.s32.totalorder %s13, 0
    %p33 = por %p31, %p32
    %p34 = scmp.ne.s32.totalorder %s23, %s26
    %p35 = scmp.eq.s32.totalorder %s18, 1
    %p36 = por %p34, %p35
    %p37 = scmp.ne.s32.totalorder %s26, %s27
    %p38 = scmp.eq.s32.totalorder %s18, 0
    %p39 = por %p37, %p38
    %p40 = scmp.ne.s32.totalorder %s26, %s27
    %p41 = scmp.eq.s32.totalorder %s19, 1
    %p42 = por %p40, %p41
    %p44 = scmp.ne.s32.totalorder %s27, %s43
    %p45 = scmp.eq.s32.totalorder %s19, 0
    %p46 = por %p44, %p45
    %s48 = sadd.s32 %s47, 1
    %p51 = scmp.eq.s32.totalorder %s13, 1
    %p52 = scmp.ne.s32.totalorder %s47, %s49
    %p53 = scmp.eq.s32.totalorder %s13, 0
    %p54 = por %p52, %p53
    %p55 = scmp.ne.s32.totalorder %s47, %s49
    %p56 = scmp.eq.s32.totalorder %s18, 1
    %p57 = por %p55, %p56
    %p58 = scmp.ne.s32.totalorder %s49, %s50
    %p59 = scmp.eq.s32.totalorder %s18, 0
    %p60 = por %p58, %p59
    %p61 = scmp.ne.s32.totalorder %s49, %s50
    %p62 = scmp.eq.s32.totalorder %s19, 1
    %p63 = por %p61, %p62
    %p65 = scmp.ne.s32.totalorder %s50, %s64
    %p66 = scmp.eq.s32.totalorder %s19, 0
    %p67 = por %p65, %p66
    %s69 = sadd.s32 %s68, 1
    %p72 = scmp.eq.s32.totalorder %s13, 1
    %p73 = scmp.ne.s32.totalorder %s68, %s70
    %p74 = scmp.eq.s32.totalorder %s13, 0
    %p75 = por %p73, %p74
    %p76 = scmp.ne.s32.totalorder %s68, %s70
    %p77 = scmp.eq.s32.totalorder %s18, 1
    %p78 = por %p76, %p77
    %p79 = scmp.ne.s32.totalorder %s70, %s71
    %p80 = scmp.eq.s32.totalorder %s18, 0
    %p81 = por %p79, %p80
    %p82 = scmp.ne.s32.totalorder %s70, %s71
    %p83 = scmp.eq.s32.totalorder %s19, 1
    %p84 = por %p82, %p83
    %p86 = scmp.ne.s32.totalorder %s71, %s85
    %p87 = scmp.eq.s32.totalorder %s19, 0
    %p88 = por %p86, %p87
    %s90 = sadd.s32 %s89, 1
    %p93 = scmp.eq.s32.totalorder %s13, 1
    %p94 = scmp.ne.s32.totalorder %s89, %s91
    %p95 = scmp.eq.s32.totalorder %s13, 0
    %p96 = por %p94, %p95
    %p97 = scmp.ne.s32.totalorder %s89, %s91
    %p98 = scmp.eq.s32.totalorder %s18, 1
    %p99 = por %p97, %p98
    %p100 = scmp.ne.s32.totalorder %s91, %s92
    %p101 = scmp.eq.s32.totalorder %s18, 0
    %p102 = por %p100, %p101
    %p103 = scmp.ne.s32.totalorder %s91, %s92
    %p104 = scmp.eq.s32.totalorder %s19, 1
    %p105 = por %p103, %p104
    %p107 = scmp.ne.s32.totalorder %s92, %s106
    %p108 = scmp.eq.s32.totalorder %s19, 0
    %p109 = por %p107, %p108
    %s111 = sadd.s32 %s110, 1
    %p114 = scmp.eq.s32.totalorder %s13, 1
    %p115 = scmp.ne.s32.totalorder %s110, %s112
    %p116 = scmp.eq.s32.totalorder %s13, 0
    %p117 = por %p115, %p116
    %p118 = scmp.ne.s32.totalorder %s110, %s112
    %p119 = scmp.eq.s32.totalorder %s18, 1
    %p120 = por %p118, %p119
    %p121 = scmp.ne.s32.totalorder %s112, %s113
    %p122 = scmp.eq.s32.totalorder %s18, 0
    %p123 = por %p121, %p122
    %p124 = scmp.ne.s32.totalorder %s112, %s113
    %p125 = scmp.eq.s32.totalorder %s19, 1
    %p126 = por %p124, %p125
    %p128 = scmp.ne.s32.totalorder %s113, %s127
    %p129 = scmp.eq.s32.totalorder %s19, 0
    %p130 = por %p128, %p129
    %s132 = sadd.s32 %s131, 1
    %p135 = scmp.eq.s32.totalorder %s13, 1
    %p136 = scmp.ne.s32.totalorder %s131, %s133
    %p137 = scmp.eq.s32.totalorder %s13, 0
    %p138 = por %p136, %p137
    %p139 = scmp.ne.s32.totalorder %s131, %s133
    %p140 = scmp.eq.s32.totalorder %s18, 1
    %p141 = por %p139, %p140
    %p142 = scmp.ne.s32.totalorder %s133, %s134
    %p143 = scmp.eq.s32.totalorder %s18, 0
    %p144 = por %p142, %p143
    %p145 = scmp.ne.s32.totalorder %s133, %s134
    %p146 = scmp.eq.s32.totalorder %s19, 1
    %p147 = por %p145, %p146
    %p149 = scmp.ne.s32.totalorder %s134, %s148
    %p150 = scmp.eq.s32.totalorder %s19, 0
    %p151 = por %p149, %p150
    %s153 = sadd.s32 %s152, 1
    %p156 = scmp.eq.s32.totalorder %s13, 1
    %p157 = scmp.ne.s32.totalorder %s152, %s154
    %p158 = scmp.eq.s32.totalorder %s13, 0
    %p159 = por %p157, %p158
    %p160 = scmp.ne.s32.totalorder %s152, %s154
    %p161 = scmp.eq.s32.totalorder %s18, 1
    %p162 = por %p160, %p161
    %p163 = scmp.ne.s32.totalorder %s154, %s155
    %p164 = scmp.eq.s32.totalorder %s18, 0
    %p165 = por %p163, %p164
    %p166 = scmp.ne.s32.totalorder %s154, %s155
    %p167 = scmp.eq.s32.totalorder %s19, 1
    %p168 = por %p166, %p167
    %p170 = scmp.ne.s32.totalorder %s155, %s169
    %p171 = scmp.eq.s32.totalorder %s19, 0
    %p172 = por %p170, %p171
    %s173 = ssub.s32 %s13, %s20
    %p174 = scmp.eq.s32.totalorder %s173, 0
    %s176 = sadd.s32 %s175, 1
    %s177 = scalar_select %p174, %s175, %s176
    %p180 = pneg %p174
    %p181 = scmp.eq.s32.totalorder %s13, 1
    %p182 = por %p180, %p181
    %p183 = scmp.ne.s32.totalorder %s175, %s178
    %p184 = scmp.eq.s32.totalorder %s13, 0
    %p185 = por %p183, %p184
    %p186 = scmp.ne.s32.totalorder %s175, %s178
    %p187 = scmp.eq.s32.totalorder %s18, 1
    %p188 = por %p186, %p187
    %p189 = scmp.ne.s32.totalorder %s178, %s179
    %p190 = scmp.eq.s32.totalorder %s18, 0
    %p191 = por %p189, %p190
    %p192 = scmp.ne.s32.totalorder %s178, %s179
    %p193 = scmp.eq.s32.totalorder %s19, 1
    %p194 = por %p192, %p193
    %p196 = scmp.ne.s32.totalorder %s179, %s195
    %p197 = scmp.eq.s32.totalorder %s19, 0
    %p198 = por %p196, %p197
    %p199 = scmp.le.s32.totalorder 1, %s13
    %p200 = scmp.lt.s32.totalorder %s13, 3
    %p201 = pnand %p199, %p200
    %p202 = pneg %p201
    // Predicated region
    $region9: #{hybrid_block_forward.1} parent=5 // pred_check
      _
    $region10: #{hybrid_block_forward.1} parent=5 // pred_check_branch
      %204 = sbr.rel (%p201) target = $region12
    $region11: #{hybrid_block_forward.1} parent=5 // pred_region
      %s205 = ssub.s32 %s13, 1
      // Predicated region
      $region13: #{hybrid_block_forward.1} parent=11 // pred_check
        %p206 = pneg %p60
      $region14: #{hybrid_block_forward.1} parent=11 // pred_check_branch
        %208 = sbr.rel (%p206) target = $region16
      $region15: #{hybrid_block_forward.1} parent=11 // pred_region
        _
      $region16: #{hybrid_block_forward.1} parent=11 // pred_fallthru
        _
      // Predicated region
      $region17: #{hybrid_block_forward.1} parent=11 // pred_check
        %p209 = pneg %p81
      $region18: #{hybrid_block_forward.1} parent=11 // pred_check_branch
        %211 = sbr.rel (%p209) target = $region20
      $region19: #{hybrid_block_forward.1} parent=11 // pred_region
        _
      $region20: #{hybrid_block_forward.1} parent=11 // pred_fallthru
        _
      // Predicated region
      $region21: #{hybrid_block_forward.1} parent=11 // pred_check
        %p212 = pneg %p102
      $region22: #{hybrid_block_forward.1} parent=11 // pred_check_branch
        %214 = sbr.rel (%p212) target = $region24
      $region23: #{hybrid_block_forward.1} parent=11 // pred_region
        _
      $region24: #{hybrid_block_forward.1} parent=11 // pred_fallthru
        _
      // Predicated region
      $region25: #{hybrid_block_forward.1} parent=11 // pred_check
        %p215 = pneg %p123
      $region26: #{hybrid_block_forward.1} parent=11 // pred_check_branch
        %217 = sbr.rel (%p215) target = $region28
      $region27: #{hybrid_block_forward.1} parent=11 // pred_region
        _
      $region28: #{hybrid_block_forward.1} parent=11 // pred_fallthru
        _
      // Predicated region
      $region29: #{hybrid_block_forward.1} parent=11 // pred_check
        %p218 = pneg %p144
      $region30: #{hybrid_block_forward.1} parent=11 // pred_check_branch
        %220 = sbr.rel (%p218) target = $region32
      $region31: #{hybrid_block_forward.1} parent=11 // pred_region
        _
      $region32: #{hybrid_block_forward.1} parent=11 // pred_fallthru
        _
      // Predicated region
      $region33: #{hybrid_block_forward.1} parent=11 // pred_check
        %p221 = pneg %p165
      $region34: #{hybrid_block_forward.1} parent=11 // pred_check_branch
        %223 = sbr.rel (%p221) target = $region36
      $region35: #{hybrid_block_forward.1} parent=11 // pred_region
        _
      $region36: #{hybrid_block_forward.1} parent=11 // pred_fallthru
        _
    $region12: #{hybrid_block_forward.1} parent=5 // pred_fallthru
      _
    %p224 = scmp.lt.s32.totalorder %s13, 2
    // Predicated region
    $region37: #{hybrid_block_forward.1} parent=5 // pred_check
      %p225 = pneg %p224
    $region38: #{hybrid_block_forward.1} parent=5 // pred_check_branch
      %227 = sbr.rel (%p225) target = $region40
    $region39: #{hybrid_block_forward.1} parent=5 // pred_region
      // Predicated region
      $region41: #{hybrid_block_forward.1} parent=39 // pred_check
        %p228 = pneg %p33
      $region42: #{hybrid_block_forward.1} parent=39 // pred_check_branch
        %230 = sbr.rel (%p228) target = $region44
      $region43: #{hybrid_block_forward.1} parent=39 // pred_region
        %p231 = scmp.lt.s32.totalorder %s13, 1
        %s232 = scalar_select %p231, %s13, 1
        %s233 = smul.addr %s232, 36
        %s234 = smul.addr %s233, 4
        %s235 = scalar_lea.vmem %s0, %s234
      $region44: #{hybrid_block_forward.1} parent=39 // pred_fallthru
        _
    $region40: #{hybrid_block_forward.1} parent=5 // pred_fallthru
      _
    %p236 = scmp.le.s32.totalorder 1, %s13
    %p237 = scmp.lt.s32.totalorder %s13, 3
    %p238 = pnand %p236, %p237
    %p239 = pneg %p238
    // Predicated region
    $region45: #{hybrid_block_forward.1} parent=5 // pred_check
      _
    $region46: #{hybrid_block_forward.1} parent=5 // pred_check_branch
      %241 = sbr.rel (%p238) target = $region48
    $region47: #{hybrid_block_forward.1} parent=5 // pred_region
      %s242 = ssub.s32 %s13, 1
      %p243 = scmp.lt.s32.totalorder %s18, 1
      %s244 = scalar_select %p243, %s18, 1
      %s245 = smul.addr %s244, 36
      %s246 = smul.addr %s245, 4
      %s247 = scalar_lea.vmem %s0, %s246
      %p248 = pneg %p39
      %p249 = pneg %p36
      %p250 = pneg %p60
      %p251 = pneg %p57
      %p252 = pneg %p81
      %p253 = pneg %p78
      %p254 = pneg %p102
      %p255 = pneg %p99
      %p256 = pneg %p123
      %p257 = pneg %p120
      %p258 = pneg %p144
      %p259 = pneg %p141
      %p260 = pneg %p165
      %p261 = pneg %p162
      %p262 = pneg %p191
      %p263 = pneg %p188
      %p264 = scmp.lt.s32.totalorder %s18, 1
      %s265 = scalar_select %p264, %s18, 1
      %s266 = smul.addr %s265, 8
      %s267 = smul.addr %s266, 8
      %s268 = scalar_lea.vmem %s7, %s267
      %p269 = scmp.lt.s32.totalorder %s18, 1
      %s270 = scalar_select %p269, %s18, 1
      %s271 = smul.addr %s270, 36
      %s272 = smul.addr %s271, 4
      %s273 = scalar_lea.vmem %s0, %s272
      %p274 = scmp.lt.s32.totalorder %s18, 1
      %s275 = scalar_select %p274, %s18, 1
      %s276 = smul.addr %s275, 8
      %s277 = smul.addr %s276, 8
      %s278 = scalar_lea.vmem %s7, %s277
      %v280 = vld [vmem:[%s1] sm:$0xff]
      %v281 = vld [vmem:[%s1 + $0x8] sm:$0xff]
      %v282 = vld [vmem:[%s1 + $0x10] sm:$0xff]
      %v283 = vld [vmem:[%s1 + $0x18] sm:$0xff]
      %v284 = vld [vmem:[%s273] sm:$0xff]
      %v285 = vld [vmem:[%s273 + $0x8] sm:$0xff]
      %v286 = vld [vmem:[%s273 + $0x10] sm:$0xff]
      %v287 = vld [vmem:[%s273 + $0x18] sm:$0xff]
      %v288 = vld [vmem:[%s273 + $0x20] sm:$0xff]
      %v289 = vld [vmem:[%s273 + $0x28] sm:$0xff]
      %v290 = vld [vmem:[%s273 + $0x30] sm:$0xff]
      %v291 = vld [vmem:[%s273 + $0x38] sm:$0xff]
      %v292 = vld [vmem:[%s273 + $0x40] sm:$0xff]
      %v293 = vld [vmem:[%s273 + $0x48] sm:$0xff]
      %v294 = vld [vmem:[%s273 + $0x50] sm:$0xff]
      %v295 = vld [vmem:[%s273 + $0x58] sm:$0xff]
      %v296 = vld [vmem:[%s273 + $0x60] sm:$0xff]
      %v297 = vld [vmem:[%s273 + $0x68] sm:$0xff]
      %v298 = vld [vmem:[%s273 + $0x70] sm:$0xff]
      %v299 = vld [vmem:[%s273 + $0x78] sm:$0xff]
      %v300 = vld [vmem:[%s273 + $0x80] sm:$0xff]
      %v301 = vld [vmem:[%s273 + $0x88] sm:$0x33]
      %v302 = vld [vmem:[%s2] sm:$0xff]
      %v303 = vld [vmem:[%s2 + $0x8] sm:$0xff]
      %v304 = vld [vmem:[%s2 + $0x10] sm:$0xff]
      %v305 = vld [vmem:[%s2 + $0x18] sm:$0xff]
      %307 = vset.pattern.permute.xlu0 0
      %308 = vperm.xlu0 %307, %v302
      %v309 = vpop.permute.xlu0 %308
      %312 = vset.pattern.permute.xlu0 0
      %313 = vperm.xlu0 %312, %v303
      %v314 = vpop.permute.xlu0 %313
      %317 = vset.pattern.permute.xlu0 0
      %318 = vperm.xlu0 %317, %v304
      %v319 = vpop.permute.xlu0 %318
      %322 = vset.pattern.permute.xlu0 0
      %323 = vperm.xlu0 %322, %v305
      %v324 = vpop.permute.xlu0 %323
      %v330 = vunpack.c.l.b16 %v280
      %v331 = vunpack.c.h.b16 %v280
      %v332 = vunpack.c.l.b16 %v281
      %v333 = vunpack.c.h.b16 %v281
      %v334 = vunpack.c.l.b16 %v282
      %v335 = vunpack.c.h.b16 %v282
      %v336 = vunpack.c.l.b16 %v283
      %v337 = vunpack.c.h.b16 %v283
      %v338 = vpack.c.b16 %v332, %v330
      %v339 = vpack.c.b16 %v333, %v331
      %v340 = vpack.c.b16 %v336, %v334
      %v341 = vpack.c.b16 %v337, %v335
      %v362 = vunpack.c.l.b16 %v284
      %v363 = vunpack.c.h.b16 %v284
      %v364 = vunpack.c.l.b16 %v285
      %v365 = vunpack.c.h.b16 %v285
      %v366 = vunpack.c.l.b16 %v286
      %v367 = vunpack.c.h.b16 %v286
      %v368 = vunpack.c.l.b16 %v287
      %v369 = vunpack.c.h.b16 %v287
      %v370 = vunpack.c.l.b16 %v288
      %v371 = vunpack.c.h.b16 %v288
      %v372 = vunpack.c.l.b16 %v289
      %v373 = vunpack.c.h.b16 %v289
      %v374 = vunpack.c.l.b16 %v290
      %v375 = vunpack.c.h.b16 %v290
      %v376 = vunpack.c.l.b16 %v291
      %v377 = vunpack.c.h.b16 %v291
      %v378 = vunpack.c.l.b16 %v292
      %v379 = vunpack.c.h.b16 %v292
      %v380 = vunpack.c.l.b16 %v293
      %v381 = vunpack.c.h.b16 %v293
      %v382 = vunpack.c.l.b16 %v294
      %v383 = vunpack.c.h.b16 %v294
      %v384 = vunpack.c.l.b16 %v295
      %v385 = vunpack.c.h.b16 %v295
      %v386 = vunpack.c.l.b16 %v296
      %v387 = vunpack.c.h.b16 %v296
      %v388 = vunpack.c.l.b16 %v297
      %v389 = vunpack.c.h.b16 %v297
      %v390 = vunpack.c.l.b16 %v298
      %v391 = vunpack.c.h.b16 %v298
      %v392 = vunpack.c.l.b16 %v299
      %v393 = vunpack.c.h.b16 %v299
      %v394 = vunpack.c.l.b16 %v300
      %v395 = vunpack.c.h.b16 %v300
      %v396 = vunpack.c.l.b16 %v301
      %v397 = vunpack.c.h.b16 %v301
      %v398 = vpack.c.b16 %v364, %v362
      %v399 = vpack.c.b16 %v365, %v363
      %v400 = vpack.c.b16 %v368, %v366
      %v401 = vpack.c.b16 %v369, %v367
      %v402 = vpack.c.b16 %v372, %v370
      %v403 = vpack.c.b16 %v373, %v371
      %v404 = vpack.c.b16 %v376, %v374
      %v405 = vpack.c.b16 %v377, %v375
      %v406 = vpack.c.b16 %v380, %v378
      %v407 = vpack.c.b16 %v381, %v379
      %v408 = vpack.c.b16 %v384, %v382
      %v409 = vpack.c.b16 %v385, %v383
      %v410 = vpack.c.b16 %v388, %v386
      %v411 = vpack.c.b16 %v389, %v387
      %v412 = vpack.c.b16 %v392, %v390
      %v413 = vpack.c.b16 %v393, %v391
      %v414 = vpack.c.b16 %v396, %v394
      %v415 = vpack.c.b16 %v397, %v395
      %vm432 = vcmask 97280
      %v434 = vsel %vm432, %v339, 0
      %v437 = vsel %vm432, %v341, 0
      %vm439 = vcmask 1045504
      %v441 = vsel %vm439, %v414, 0
      %v444 = vsel %vm439, %v415, 0
      %446 = vmatpush.bf16.msra.mxu0 %v412
      %447 = vmatpush.bf16.msra.mxu0 %v410
      %448 = vmatpush.bf16.msra.mxu0 %v408
      %449 = vmatpush.bf16.msra.mxu0 %v406
      %450 = vmatpush.bf16.msra.mxu0 %v404
      %451 = vmatpush.bf16.msra.mxu0 %v402
      %452 = vmatpush.bf16.msra.mxu0 %v400
      %453 = vmatpush.bf16.msra.mxu0 %v398
      %454 = vmatmul.bf16.gmra.mxu0 %v338
      %v455 = vpop.f32.mrf.mxu0
      %v456 = vadd.f32 %v309, %v455
      %v457 = vpop.f32.mrf.mxu0
      %v458 = vadd.f32 %v314, %v457
      %459 = vmatmul.bf16.gmra.mxu0 %v340
      %v460 = vpop.f32.mrf.mxu0
      %v461 = vadd.f32 %v319, %v460
      %v462 = vpop.f32.mrf.mxu0
      %v463 = vadd.f32 %v324, %v462
      %464 = vdwg.mxu0
      %465 = vmatpush.bf16.msra.mxu0 0
      %466 = vmatpush.bf16.msra.mxu0 0
      %467 = vmatpush.bf16.msra.mxu0 0
      %468 = vmatpush.bf16.msra.mxu0 0
      %469 = vmatpush.bf16.msra.mxu0 0
      %470 = vmatpush.bf16.msra.mxu0 0
      %471 = vmatpush.bf16.msra.mxu0 0
      %472 = vmatpush.bf16.msra.mxu0 %v441
      %473 = vmatmul.bf16.gmra.mxu0 %v434
      %v474 = vpop.f32.mrf.mxu0
      %v475 = vadd.f32 %v456, %v474
      %v476 = vpop.f32.mrf.mxu0
      %v477 = vadd.f32 %v458, %v476
      %478 = vmatmul.bf16.gmra.mxu0 %v437
      %v479 = vpop.f32.mrf.mxu0
      %v480 = vadd.f32 %v461, %v479
      %v481 = vpop.f32.mrf.mxu0
      %v482 = vadd.f32 %v463, %v481
      %483 = vdwg.mxu0
      %484 = vmatpush.bf16.msra.mxu0 %v413
      %485 = vmatpush.bf16.msra.mxu0 %v411
      %486 = vmatpush.bf16.msra.mxu0 %v409
      %487 = vmatpush.bf16.msra.mxu0 %v407
      %488 = vmatpush.bf16.msra.mxu0 %v405
      %489 = vmatpush.bf16.msra.mxu0 %v403
      %490 = vmatpush.bf16.msra.mxu0 %v401
      %491 = vmatpush.bf16.msra.mxu0 %v399
      %492 = vmatmul.bf16.gmra.mxu0 %v338
      %v493 = vpop.f32.mrf.mxu0
      %v494 = vadd.f32 %v309, %v493
      %v495 = vpop.f32.mrf.mxu0
      %v496 = vadd.f32 %v314, %v495
      %497 = vmatmul.bf16.gmra.mxu0 %v340
      %v498 = vpop.f32.mrf.mxu0
      %v499 = vadd.f32 %v319, %v498
      %v500 = vpop.f32.mrf.mxu0
      %v501 = vadd.f32 %v324, %v500
      %502 = vdwg.mxu0
      %503 = vmatpush.bf16.msra.mxu0 0
      %504 = vmatpush.bf16.msra.mxu0 0
      %505 = vmatpush.bf16.msra.mxu0 0
      %506 = vmatpush.bf16.msra.mxu0 0
      %507 = vmatpush.bf16.msra.mxu0 0
      %508 = vmatpush.bf16.msra.mxu0 0
      %509 = vmatpush.bf16.msra.mxu0 0
      %510 = vmatpush.bf16.msra.mxu0 %v444
      %511 = vmatmul.bf16.gmra.mxu0 %v434
      %v512 = vpop.f32.mrf.mxu0
      %v513 = vadd.f32 %v494, %v512
      %v514 = vpop.f32.mrf.mxu0
      %v515 = vadd.f32 %v496, %v514
      %516 = vmatmul.bf16.gmra.mxu0 %v437
      %v517 = vpop.f32.mrf.mxu0
      %v518 = vadd.f32 %v499, %v517
      %v519 = vpop.f32.mrf.mxu0
      %v520 = vadd.f32 %v501, %v519
      %521 = vdwg.mxu0
      %v522 = vadd.f32 %v475, %v513
      %523 = vadd.xlane.f32.xlu0 %v522
      %v524 = vpop.xlane.xlu0 %523
      %v525 = vadd.f32 %v477, %v515
      %526 = vadd.xlane.f32.xlu0 %v525
      %v527 = vpop.xlane.xlu0 %526
      %v528 = vadd.f32 %v480, %v518
      %529 = vadd.xlane.f32.xlu0 %v528
      %v530 = vpop.xlane.xlu0 %529
      %v531 = vadd.f32 %v482, %v520
      %532 = vadd.xlane.f32.xlu0 %v531
      %v533 = vpop.xlane.xlu0 %532
      %v534 = vmul.f32 %v524, 0.00390625
      %v535 = vmul.f32 %v527, 0.00390625
      %v536 = vmul.f32 %v530, 0.00390625
      %v537 = vmul.f32 %v533, 0.00390625
      %v538 = vld [vmem:[%s3] sm:$0x3]
      %vm539 = vcmask 261120
      %v541 = vsel %vm539, %v538, 0
      %543 = vmatpush.msra.mxu0 0.0
      %544 = vmatpush.msra.mxu0 0.0
      %545 = vmatpush.msra.mxu0 0.0
      %546 = vmatpush.msra.mxu0 0.0
      %547 = vmatpush.msra.mxu0 0.0
      %548 = vmatpush.msra.mxu0 0.0
      %549 = vmatpush.msra.mxu0 0.0
      %550 = vmatpush.msra.mxu0 0.0
      %551 = vmatpush.msra.mxu0 0.0
      %552 = vmatpush.msra.mxu0 0.0
      %553 = vmatpush.msra.mxu0 0.0
      %554 = vmatpush.msra.mxu0 0.0
      %555 = vmatpush.msra.mxu0 %v537
      %556 = vmatpush.msra.mxu0 %v536
      %557 = vmatpush.msra.mxu0 %v535
      %558 = vmatpush.msra.mxu0 %v534
      %559 = vmatmul.f32.gmra.mxu0 %v541
      %v560 = vpop.f32.mrf.mxu0
      %v561 = vadd.f32 0.0, %v560
      %562 = vdwg.mxu0
      %v563 = vmax.f32 %v561, 0.0
      %v564 = vld [vmem:[%s4] sm:$0xff]
      %v565 = vld [vmem:[%s4 + $0x8] sm:$0xff]
      %v566 = vld [vmem:[%s4 + $0x10] sm:$0xff]
      %v567 = vld [vmem:[%s4 + $0x18] sm:$0xff]
      %vm568 = vcmask 15360
      %v570 = vsel %vm568, %v564, 0
      %v573 = vsel %vm568, %v565, 0
      %v576 = vsel %vm568, %v566, 0
      %v579 = vsel %vm568, %v567, 0
      %vm581 = vcmask 1041408
      %v583 = vsel %vm581, %v563, 0
      %585 = vmatpush.msra.mxu0 0.0
      %586 = vmatpush.msra.mxu0 0.0
      %587 = vmatpush.msra.mxu0 0.0
      %588 = vmatpush.msra.mxu0 0.0
      %589 = vmatpush.msra.mxu0 0.0
      %590 = vmatpush.msra.mxu0 0.0
      %591 = vmatpush.msra.mxu0 0.0
      %592 = vmatpush.msra.mxu0 0.0
      %593 = vmatpush.msra.mxu0 0.0
      %594 = vmatpush.msra.mxu0 0.0
      %595 = vmatpush.msra.mxu0 0.0
      %596 = vmatpush.msra.mxu0 0.0
      %597 = vmatpush.msra.mxu0 0.0
      %598 = vmatpush.msra.mxu0 0.0
      %599 = vmatpush.msra.mxu0 0.0
      %600 = vmatpush.msra.mxu0 %v583
      %601 = vmatmul.f32.gmra.mxu0 %v570
      %v602 = vpop.f32.mrf.mxu0
      %v603 = vadd.f32 0.0, %v602
      %604 = vmatmul.f32.gmra.mxu0 %v573
      %v605 = vpop.f32.mrf.mxu0
      %v606 = vadd.f32 0.0, %v605
      %607 = vmatmul.f32.gmra.mxu0 %v576
      %v608 = vpop.f32.mrf.mxu0
      %v609 = vadd.f32 0.0, %v608
      %610 = vmatmul.f32.gmra.mxu0 %v579
      %v611 = vpop.f32.mrf.mxu0
      %v612 = vadd.f32 0.0, %v611
      %613 = vdwg.mxu0
      %v614 = vxor.u32 %v603, 2147483648
      %v615 = vxor.u32 %v606, 2147483648
      %v616 = vxor.u32 %v609, 2147483648
      %v617 = vxor.u32 %v612, 2147483648
      %v618 = vmul.f32 %v614, 1.442695
      %v619 = vpow.pop %v618
      %v620 = vmul.f32 %v615, 1.442695
      %v621 = vpow.pop %v620
      %v622 = vmul.f32 %v616, 1.442695
      %v623 = vpow.pop %v622
      %v624 = vmul.f32 %v617, 1.442695
      %v625 = vpow.pop %v624
      %v626 = vadd.f32 %v619, 1.0
      %v627 = vadd.f32 %v621, 1.0
      %v628 = vadd.f32 %v623, 1.0
      %v629 = vadd.f32 %v625, 1.0
      %v630 = vrcp.pop %v626
      %v631 = vmul.f32 %v626, %v630
      %v632 = vsub.f32 1.0, %v631
      %v633 = vmul.f32 %v630, %v632
      %v634 = vadd.f32 %v630, %v633
      %vm635 = vweird.f32 %v626
      %vm636 = vweird.f32 %v630
      %vm637 = vmor %vm635, %vm636
      %v638 = vsel %vm637, %v630, %v634
      %v639 = vand.u32 2147483647, %v626
      %vm640 = vcmp.eq.f32.partialorder %v639, 8.507059e+37
      %v641 = vand.u32 %v626, 2147483648
      %v642 = vor.u32 1.1754944e-38, %v641
      %v643 = vsel %vm640, %v642, %v638
      %v644 = vmul.f32 1.0, %v643
      %v645 = vrcp.pop %v627
      %v646 = vmul.f32 %v627, %v645
      %v647 = vsub.f32 1.0, %v646
      %v648 = vmul.f32 %v645, %v647
      %v649 = vadd.f32 %v645, %v648
      %vm650 = vweird.f32 %v627
      %vm651 = vweird.f32 %v645
      %vm652 = vmor %vm650, %vm651
      %v653 = vsel %vm652, %v645, %v649
      %v654 = vand.u32 2147483647, %v627
      %vm655 = vcmp.eq.f32.partialorder %v654, 8.507059e+37
      %v656 = vand.u32 %v627, 2147483648
      %v657 = vor.u32 1.1754944e-38, %v656
      %v658 = vsel %vm655, %v657, %v653
      %v659 = vmul.f32 1.0, %v658
      %v660 = vrcp.pop %v628
      %v661 = vmul.f32 %v628, %v660
      %v662 = vsub.f32 1.0, %v661
      %v663 = vmul.f32 %v660, %v662
      %v664 = vadd.f32 %v660, %v663
      %vm665 = vweird.f32 %v628
      %vm666 = vweird.f32 %v660
      %vm667 = vmor %vm665, %vm666
      %v668 = vsel %vm667, %v660, %v664
      %v669 = vand.u32 2147483647, %v628
      %vm670 = vcmp.eq.f32.partialorder %v669, 8.507059e+37
      %v671 = vand.u32 %v628, 2147483648
      %v672 = vor.u32 1.1754944e-38, %v671
      %v673 = vsel %vm670, %v672, %v668
      %v674 = vmul.f32 1.0, %v673
      %v675 = vrcp.pop %v629
      %v676 = vmul.f32 %v629, %v675
      %v677 = vsub.f32 1.0, %v676
      %v678 = vmul.f32 %v675, %v677
      %v679 = vadd.f32 %v675, %v678
      %vm680 = vweird.f32 %v629
      %vm681 = vweird.f32 %v675
      %vm682 = vmor %vm680, %vm681
      %v683 = vsel %vm682, %v675, %v679
      %v684 = vand.u32 2147483647, %v629
      %vm685 = vcmp.eq.f32.partialorder %v684, 8.507059e+37
      %v686 = vand.u32 %v629, 2147483648
      %v687 = vor.u32 1.1754944e-38, %v686
      %v688 = vsel %vm685, %v687, %v683
      %v689 = vmul.f32 1.0, %v688
      %691 = vset.pattern.permute.xlu0 0
      %692 = vperm.xlu0 %691, %v644
      %v693 = vpop.permute.xlu0 %692
      %696 = vset.pattern.permute.xlu0 0
      %697 = vperm.xlu0 %696, %v659
      %v698 = vpop.permute.xlu0 %697
      %701 = vset.pattern.permute.xlu0 0
      %702 = vperm.xlu0 %701, %v674
      %v703 = vpop.permute.xlu0 %702
      %706 = vset.pattern.permute.xlu0 0
      %707 = vperm.xlu0 %706, %v689
      %v708 = vpop.permute.xlu0 %707
      %v710 = vmul.f32 %v475, %v693
      %v711 = vmul.f32 %v513, %v693
      %v712 = vmul.f32 %v477, %v698
      %v713 = vmul.f32 %v515, %v698
      %v714 = vmul.f32 %v480, %v703
      %v715 = vmul.f32 %v518, %v703
      %v716 = vmul.f32 %v482, %v708
      %v717 = vmul.f32 %v520, %v708
      %v718 = vld [vmem:[%s5] sm:$0xff]
      %v719 = vld [vmem:[%s5 + $0x8] sm:$0xff]
      %v720 = vld [vmem:[%s5 + $0x10] sm:$0xff]
      %v721 = vld [vmem:[%s5 + $0x18] sm:$0xff]
      %723 = vset.pattern.permute.xlu0 0
      %724 = vperm.xlu0 %723, %v718
      %v725 = vpop.permute.xlu0 %724
      %728 = vset.pattern.permute.xlu0 0
      %729 = vperm.xlu0 %728, %v719
      %v730 = vpop.permute.xlu0 %729
      %733 = vset.pattern.permute.xlu0 0
      %734 = vperm.xlu0 %733, %v720
      %v735 = vpop.permute.xlu0 %734
      %738 = vset.pattern.permute.xlu0 0
      %739 = vperm.xlu0 %738, %v721
      %v740 = vpop.permute.xlu0 %739
      %v742 = vmul.f32 %v710, %v725
      %v743 = vmul.f32 %v711, %v725
      %v744 = vmul.f32 %v712, %v730
      %v745 = vmul.f32 %v713, %v730
      %v746 = vmul.f32 %v714, %v735
      %v747 = vmul.f32 %v715, %v735
      %v748 = vmul.f32 %v716, %v740
      %v749 = vmul.f32 %v717, %v740
      %v750 = vld [vmem:[%s6] sm:$0xff]
      %v751 = vld [vmem:[%s6 + $0x8] sm:$0xff]
      %v752 = vld [vmem:[%s6 + $0x10] sm:$0xff]
      %v753 = vld [vmem:[%s6 + $0x18] sm:$0xff]
      %755 = vset.pattern.permute.xlu0 0
      %756 = vperm.xlu0 %755, %v750
      %v757 = vpop.permute.xlu0 %756
      %760 = vset.pattern.permute.xlu0 0
      %761 = vperm.xlu0 %760, %v751
      %v762 = vpop.permute.xlu0 %761
      %765 = vset.pattern.permute.xlu0 0
      %766 = vperm.xlu0 %765, %v752
      %v767 = vpop.permute.xlu0 %766
      %770 = vset.pattern.permute.xlu0 0
      %771 = vperm.xlu0 %770, %v753
      %v772 = vpop.permute.xlu0 %771
      %v774 = vadd.f32 %v742, %v757
      %v775 = vadd.f32 %v743, %v757
      %v776 = vadd.f32 %v744, %v762
      %v777 = vadd.f32 %v745, %v762
      %v778 = vadd.f32 %v746, %v767
      %v779 = vadd.f32 %v747, %v767
      %v780 = vadd.f32 %v748, %v772
      %v781 = vadd.f32 %v749, %v772
      %v782 = vmax.f32 %v774, 0.0
      %v783 = vmax.f32 %v775, 0.0
      %v784 = vmax.f32 %v776, 0.0
      %v785 = vmax.f32 %v777, 0.0
      %v786 = vmax.f32 %v778, 0.0
      %v787 = vmax.f32 %v779, 0.0
      %v788 = vmax.f32 %v780, 0.0
      %v789 = vmax.f32 %v781, 0.0
      %790 = vst [vmem:[%s278] sm:$0xff] %v782
      %791 = vst [vmem:[%s278 + $0x8] sm:$0xff] %v783
      %792 = vst [vmem:[%s278 + $0x10] sm:$0xff] %v784
      %793 = vst [vmem:[%s278 + $0x18] sm:$0xff] %v785
      %794 = vst [vmem:[%s278 + $0x20] sm:$0xff] %v786
      %795 = vst [vmem:[%s278 + $0x28] sm:$0xff] %v787
      %796 = vst [vmem:[%s278 + $0x30] sm:$0xff] %v788
      %797 = vst [vmem:[%s278 + $0x38] sm:$0xff] %v789
      %p798 = scmp.lt.s32.totalorder %s18, 1
      %s799 = scalar_select %p798, %s18, 1
      %s800 = smul.addr %s799, 8
      %s801 = smul.addr %s800, 8
      %s802 = scalar_lea.vmem %s7, %s801
      // Predicated region
      $region49: #{hybrid_block_forward.1} parent=47 // pred_check
        %p803 = pneg %p188
      $region50: #{hybrid_block_forward.1} parent=47 // pred_check_branch
        %805 = sbr.rel (%p803) target = $region52
      $region51: #{hybrid_block_forward.1} parent=47 // pred_region
        _
      $region52: #{hybrid_block_forward.1} parent=47 // pred_fallthru
        _
    $region48: #{hybrid_block_forward.1} parent=5 // pred_fallthru
      _
    %p806 = scmp.le.s32.totalorder 2, %s13
    // Predicated region
    $region53: #{hybrid_block_forward.1} parent=5 // pred_check
      %p807 = pneg %p806
    $region54: #{hybrid_block_forward.1} parent=5 // pred_check_branch
      %809 = sbr.rel (%p807) target = $region56
    $region55: #{hybrid_block_forward.1} parent=5 // pred_region
      %s810 = ssub.s32 %s13, 2
      // Predicated region
      $region57: #{hybrid_block_forward.1} parent=55 // pred_check
        %p811 = pneg %p194
      $region58: #{hybrid_block_forward.1} parent=55 // pred_check_branch
        %813 = sbr.rel (%p811) target = $region60
      $region59: #{hybrid_block_forward.1} parent=55 // pred_region
        %p814 = scmp.lt.s32.totalorder %s19, 1
        %s815 = scalar_select %p814, %s19, 1
        %s816 = smul.addr %s815, 8
        %s817 = smul.addr %s816, 8
        %s818 = scalar_lea.vmem %s7, %s817
      $region60: #{hybrid_block_forward.1} parent=55 // pred_fallthru
        _
    $region56: #{hybrid_block_forward.1} parent=5 // pred_fallthru
      _
  $region6: #{hybrid_block_forward.1} parent=0 // loop_footer
    %s17 = sadd.s32 1, %s13
  $region7: #{hybrid_block_forward.1} parent=0 // loop_footer_branch
    %12 = sbr.rel target = $region3
  $region8: #{hybrid_block_forward.1} parent=0 // loop_exit
    _

</llo_original>
